<compile_context>
chip_gen: v5e
topology: v5e:2x2
jax: 0.10.0
libtpu: 0.0.40
codegen_flags: <defaults>
</compile_context>

<pallas_src>
import math

import jax
import jax.numpy as jnp
import numpy as np
from jax.experimental import pallas as pl
from jax.experimental.pallas import tpu as pltpu

_NEG_BIG = -1e30   # pad value for train columns: exp(arg + _NEG_BIG) == 0.0


# ---------------------------------------------------------------------------
# Tiling / VMEM helpers (generation aware)
# ---------------------------------------------------------------------------

def _round_up(x, m):
    return ((x + m - 1) // m) * m


def _vmem_budget():
    """Returns (tile working-set budget, vmem_limit_bytes) from the chip's VMEM."""
    cap = 64 * 1024 * 1024                       # conservative fallback (v7x-sized)
    try:
        cap = int(getattr(pltpu.get_tpu_info(), "vmem_capacity_bytes", cap))
    except Exception:
        pass
    # ~48 MiB scoped limit on v7x (64 MiB physical); 64 MiB on v5e/v6e (128 MiB).
    limit = min(cap * 3 // 4, 64 * 1024 * 1024)
    return limit // 2, limit


def _default_tile_sizes():
    """Large, step-overhead-amortizing tiles; per-generation row tile."""
    try:
        kind = jax.devices()[0].device_kind.lower()
    except Exception:
        kind = ""
    if any(t in kind for t in ("v2", "v3", "v4", "v5")):
        return 256, 2048              # 128x128-MXU generations
    return 512, 2048                  # v6e / v7x


def _choose_tiles(M, N, D_pad, tm_req, tn_req, in_itemsize, budget):
    tm = min(tm_req, _round_up(M, 8))
    tn = min(tn_req, _round_up(N, 128))

    def ws(a, b):
        inputs = 2 * in_itemsize * (a * D_pad + D_pad * b)    # double-buffered x / yt
        norms = 2 * 4 * (a * 128 + 8 * b)                     # layout-padded norm rows
        out = 2 * 4 * a * b                                   # output tile (worst case)
        interm = 3 * 4 * a * b                                # f32 (tm,tn) temporaries
        return inputs + norms + out + interm

    while ws(tm, tn) > budget and (tm > 8 or tn > 128):
        if tn >= tm and tn > 128:
            tn = max(128, _round_up(tn // 2, 128))
        elif tm > 8:
            tm = max(8, _round_up(tm // 2, 8))
        else:
            tn = max(128, _round_up(tn // 2, 128))
    # TODO(synk): for very large feature dims D, chunk the contraction (K) axis
    # with an extra "arbitrary" grid axis + f32 accumulator instead of shrinking
    # tm/tn (wrong axis to shrink, esp. on v7x's 64 MiB VMEM).
    return tm, tn


# ---------------------------------------------------------------------------
# Shared operand preparation (grid-invariant work hoisted out of the kernels)
# ---------------------------------------------------------------------------

def _prepare_scaled(bandwidths, test_Xs, train_Xs, feat_mask):
    """Flatten to 2-D, apply 1/bandwidth (and feat_mask) scaling, and center by
    the scaled train mean (translation-invariant for pairwise distances; shrinks
    the norms used in the ||x||^2+||y||^2-2x.y decomposition)."""
    num_channel = test_Xs.shape[1] if test_Xs.ndim > 1 else 1
    if test_Xs.ndim != 2:
        test_Xs = test_Xs.reshape(test_Xs.shape[0], -1)
    if train_Xs.ndim != 2:
        train_Xs = train_Xs.reshape(train_Xs.shape[0], -1)

    test_Xs = test_Xs.astype(jnp.float32)
    train_Xs = train_Xs.astype(jnp.float32)
    bandwidths = bandwidths.astype(jnp.float32)

    M, D = test_Xs.shape
    N, D2 = train_Xs.shape
    assert D == D2 and bandwidths.shape == (D,)

    scale = 1.0 / bandwidths
    if feat_mask is not None:
        feat_mask = jnp.asarray(feat_mask, jnp.float32)
        if feat_mask.ndim != 2 and num_channel == 3:
            feat_mask = jnp.broadcast_to(feat_mask, (3,) + feat_mask.shape)
        # TODO(synk): PyTorch keeps a 2-D feat_mask un-flattened; only flattened
        # per-feature masks are supported here.
        feat_mask = feat_mask.reshape(-1)
        assert feat_mask.size == D, "feat_mask does not match feature dim"
        scale = scale * feat_mask

    x = test_Xs * scale[None, :]                     # [M, D]
    y = train_Xs * scale[None, :]                    # [N, D]
    mu = jnp.mean(y, axis=0, keepdims=True)
    return x - mu, y - mu


# ---------------------------------------------------------------------------
# Pallas kernel 1: pairwise Gaussian (log-)kernel matrix (GaussianKernel)
# ---------------------------------------------------------------------------

def _make_pairwise_kernel(return_log_kernel_value, use_f32_precision):
    precision = jax.lax.Precision.HIGHEST if use_f32_precision else None

    def kernel(x2_ref, y2_ref, x_ref, yt_ref, out_ref):
        xy = jnp.dot(x_ref[...], yt_ref[...],
                     preferred_element_type=jnp.float32, precision=precision)
        sq = jnp.maximum(x2_ref[...] + y2_ref[...] - 2.0 * xy, 0.0)
        log_exp = -0.5 * sq
        if return_log_kernel_value:
            out_ref[...] = log_exp
        else:
            out_ref[...] = jnp.exp(log_exp)

    return kernel


def gaussian_kernel(bandwidths, test_Xs, train_Xs, feat_mask=None,
                    return_log_kernel_value=False, tm=None, tn=None,
                    use_bf16_matmul=False):
    """JAX/Pallas equivalent of GaussianKernel.forward (full M x N matrix)."""
    x, y = _prepare_scaled(bandwidths, test_Xs, train_Xs, feat_mask)
    M, D = x.shape
    N = y.shape[0]

    x2 = jnp.sum(x * x, axis=-1, keepdims=True)          # [M, 1]
    y2 = jnp.sum(y * y, axis=-1, keepdims=True).T        # [1, N]
    yt = y.T                                             # [D, N]

    in_dtype = jnp.bfloat16 if use_bf16_matmul else jnp.float32
    x = x.astype(in_dtype)
    yt = yt.astype(in_dtype)

    tm_d, tn_d = _default_tile_sizes()
    tm = tm_d if tm is None else tm
    tn = tn_d if tn is None else tn
    D_pad = _round_up(D, 128)
    budget, limit = _vmem_budget()
    tm, tn = _choose_tiles(M, N, D_pad, tm, tn, jnp.dtype(in_dtype).itemsize, budget)
    M_pad = _round_up(M, tm)
    N_pad = _round_up(N, tn)

    x = jnp.pad(x, ((0, M_pad - M), (0, D_pad - D)))
    x2 = jnp.pad(x2, ((0, M_pad - M), (0, 0)))
    yt = jnp.pad(yt, ((0, D_pad - D), (0, N_pad - N)))
    y2 = jnp.pad(y2, ((0, 0), (0, N_pad - N)))

    grid = (M_pad // tm, N_pad // tn)
    itemsize = jnp.dtype(in_dtype).itemsize

    cost = pl.CostEstimate(
        flops=2 * M_pad * N_pad * D_pad + 5 * M_pad * N_pad,
        transcendentals=0 if return_log_kernel_value else M_pad * N_pad,
        bytes_accessed=(itemsize * (M_pad * D_pad
                                    + (M_pad // tm) * D_pad * N_pad)  # yt re-stream
                        + 4 * (M_pad + N_pad + M_pad * N_pad)),
    )

    out = pl.pallas_call(
        _make_pairwise_kernel(return_log_kernel_value, not use_bf16_matmul),
        out_shape=jax.ShapeDtypeStruct((M_pad, N_pad), jnp.float32),
        grid_spec=pltpu.PrefetchScalarGridSpec(
            num_scalar_prefetch=0,
            grid=grid,
            in_specs=[
                pl.BlockSpec((tm, 1), lambda i, j: (i, 0)),        # ||x||^2
                pl.BlockSpec((1, tn), lambda i, j: (0, j)),        # ||y||^2
                pl.BlockSpec((tm, D_pad), lambda i, j: (i, 0)),    # test tile
                pl.BlockSpec((D_pad, tn), lambda i, j: (0, j)),    # train^T tile
            ],
            out_specs=pl.BlockSpec((tm, tn), lambda i, j: (i, j)),
        ),
        compiler_params=pltpu.CompilerParams(
            dimension_semantics=("parallel", "parallel"),
            vmem_limit_bytes=limit,
        ),
        cost_estimate=cost,
    )(x2, y2, x, yt)

    return out[:M, :N]


# ---------------------------------------------------------------------------
# Pallas kernel 2: FUSED KDE density (MultivariateKDE.forward, continuous)
#   density_i = sum_j exp((log_k_ij - Z)/Z)
#             = sum_j exp( (x_i.y_j)/Z - 0.5||x_i||^2/Z - 0.5||y_j||^2/Z - 1 )
# The 1/Z factors are folded into the wrapper-side operands so the kernel body
# is a single MXU matmul + VPU adds + EUP exp + XLU row-sum, accumulated into
# an output-resident (tm, 1) block over the train (j) grid axis.
# ---------------------------------------------------------------------------

def _make_density_kernel(use_f32_precision):
    precision = jax.lax.Precision.HIGHEST if use_f32_precision else None

    def kernel(a_ref, b_ref, x_ref, yt_ref, out_ref):
        j = pl.program_id(1)

        @pl.when(j == 0)
        def _init():
            out_ref[...] = jnp.zeros_like(out_ref)

        xy = jnp.dot(x_ref[...], yt_ref[...],
                     preferred_element_type=jnp.float32, precision=precision)
        arg = xy + a_ref[...] + b_ref[...]          # (tm, tn): (log_k - Z)/Z
        e = jnp.exp(arg)                            # padded cols -> exp(-1e30) == 0
        out_ref[...] += jnp.sum(e, axis=-1, keepdims=True)

    return kernel


def kde_density(bandwidths, test_Xs, train_Xs, Z, feat_mask=None,
                tm=None, tn=None, use_bf16_matmul=False):
    """Fused Pallas path for the continuous MultivariateKDE density."""
    x, y = _prepare_scaled(bandwidths, test_Xs, train_Xs, feat_mask)
    M, D = x.shape
    N = y.shape[0]

    Z = jnp.asarray(Z, jnp.float32)
    a = -0.5 * jnp.sum(x * x, axis=-1, keepdims=True) / Z          # [M, 1]
    b = (-0.5 * jnp.sum(y * y, axis=-1, keepdims=True) / Z - 1.0).T  # [1, N]
    xs = x / Z                                                      # so MXU gives x.y/Z
    yt = y.T                                                        # [D, N]

    # NOTE(bf16): with bf16 MXU inputs the norm-trick loses precision near
    # coincident points; data is mean-centered above to shrink the norms.
    in_dtype = jnp.bfloat16 if use_bf16_matmul else jnp.float32
    xs = xs.astype(in_dtype)
    yt = yt.astype(in_dtype)

    tm_d, tn_d = _default_tile_sizes()
    tm = tm_d if tm is None else tm
    tn = tn_d if tn is None else tn
    D_pad = _round_up(D, 128)
    budget, limit = _vmem_budget()
    tm, tn = _choose_tiles(M, N, D_pad, tm, tn, jnp.dtype(in_dtype).itemsize, budget)
    M_pad = _round_up(M, tm)
    N_pad = _round_up(N, tn)

    xs = jnp.pad(xs, ((0, M_pad - M), (0, D_pad - D)))
    a = jnp.pad(a, ((0, M_pad - M), (0, 0)))
    yt = jnp.pad(yt, ((0, D_pad - D), (0, N_pad - N)))
    b = jnp.pad(b, ((0, 0), (0, N_pad - N)), constant_values=_NEG_BIG)

    grid = (M_pad // tm, N_pad // tn)
    itemsize = jnp.dtype(in_dtype).itemsize

    # TODO(synk): when D_pad*N_pad*itemsize comfortably fits VMEM, make yt a
    # full-extent resident block to eliminate the per-row-tile re-stream.
    cost = pl.CostEstimate(
        flops=2 * M_pad * N_pad * D_pad + 6 * M_pad * N_pad,
        transcendentals=M_pad * N_pad,
        bytes_accessed=(itemsize * (M_pad * D_pad
                                    + (M_pad // tm) * D_pad * N_pad)   # yt re-stream
                        + 4 * (2 * M_pad + N_pad)),
    )

    out = pl.pallas_call(
        _make_density_kernel(not use_bf16_matmul),
        out_shape=jax.ShapeDtypeStruct((M_pad, 1), jnp.float32),
        grid_spec=pltpu.PrefetchScalarGridSpec(
            num_scalar_prefetch=0,
            grid=grid,
            in_specs=[
                pl.BlockSpec((tm, 1), lambda i, j: (i, 0)),        # -0.5||x||^2/Z
                pl.BlockSpec((1, tn), lambda i, j: (0, j)),        # -0.5||y||^2/Z - 1
                pl.BlockSpec((tm, D_pad), lambda i, j: (i, 0)),    # x/Z tile
                pl.BlockSpec((D_pad, tn), lambda i, j: (0, j)),    # train^T tile
            ],
            out_specs=pl.BlockSpec((tm, 1), lambda i, j: (i, 0)),  # row-sum accumulator
        ),
        compiler_params=pltpu.CompilerParams(
            dimension_semantics=("parallel", "arbitrary"),
            vmem_limit_bytes=limit,
        ),
        cost_estimate=cost,
    )(a, b, xs, yt)

    return out[:M, 0]


# ---------------------------------------------------------------------------
# MultivariateKDE forward
# ---------------------------------------------------------------------------

def scott_bandwidth(train_data):
    """Scott's rule, matching the PyTorch _compute_bw (unbiased std, clamps)."""
    n, d = train_data.shape
    std = jnp.std(train_data.astype(jnp.float32), axis=0, ddof=1)
    std = jnp.maximum(std, 0.01)
    bw = 1.06 * std * (float(n) ** (-1.0 / (4 + d)))
    return jnp.minimum(bw, 0.49)


def aitchison_aitken_kernel(bandwidths, test_Xs, train_Xs, num_levels, inv=False):
    # TODO(synk): discrete AitchisonAitken kernel (data-dependent per-feature
    # equality) not ported to Pallas; plain-JAX fallback kept for parity.
    eq = (test_Xs[:, None, :] == train_Xs[None, :, :]).astype(jnp.float32)
    if inv:
        true_v = bandwidths / (num_levels - 1)
        false_v = 1.0 - bandwidths
    else:
        true_v = 1.0 - bandwidths
        false_v = bandwidths / (num_levels - 1)
    diff_mat = eq * true_v[None, None, :] + (1.0 - eq) * false_v[None, None, :]
    log_dist = jnp.sum(jnp.log(diff_mat), -1) - jnp.sum(jnp.log(bandwidths))
    if train_Xs.shape[1] > 50:
        # NOTE: replicates the original PyTorch behavior verbatim.
        max_log = jnp.max(log_dist, -1, keepdims=True)
        return max_log * jnp.exp(log_dist - max_log)
    return jnp.exp(log_dist)


def multivariate_kde_forward(train_data, test_data, feature_is_continuous=True,
                             num_levels=None, use_bf16_matmul=False):
    """JAX/Pallas equivalent of MultivariateKDE.forward(test_data)."""
    train_data = jnp.asarray(train_data, jnp.float32)
    test_data = jnp.asarray(test_data, jnp.float32)
    n, d = train_data.shape
    bw = scott_bandwidth(train_data)

    if feature_is_continuous:
        Z = (0.5 * d * math.log(2.0 * math.pi)
             + jnp.sum(jnp.log(bw)) + math.log(float(n)))
        density = kde_density(bw, test_data, train_data, Z,
                              use_bf16_matmul=use_bf16_matmul)
    else:
        assert num_levels is not None
        k = aitchison_aitken_kernel(bw, test_data, train_data, num_levels)
        density = jnp.mean(k, axis=-1)
    return density


# ---------------------------------------------------------------------------
# Pure-JAX references (explicit-difference distances, as in the PyTorch code)
# ---------------------------------------------------------------------------

def _gaussian_reference(bandwidths, test_Xs, train_Xs, feat_mask=None,
                        return_log_kernel_value=False):
    if test_Xs.ndim != 2:
        test_Xs = test_Xs.reshape(test_Xs.shape[0], -1)
    if train_Xs.ndim != 2:
        train_Xs = train_Xs.reshape(train_Xs.shape[0], -1)
    h = bandwidths[None, :]
    t = test_Xs / h
    r = train_Xs / h
    if feat_mask is not None:
        fm = feat_mask.reshape(-1)[None, :]
        t = t * fm
        r = r * fm
    diffs = t[:, None, :] - r[None, :, :]
    dist = jnp.sqrt(jnp.sum(diffs * diffs, axis=-1))
    log_exp = -0.5 * dist ** 2
    return log_exp if return_log_kernel_value else jnp.exp(log_exp)


def _kde_reference(train_data, test_data):
    n, d = train_data.shape
    bw = scott_bandwidth(train_data)
    log_k = _gaussian_reference(bw, test_data, train_data,
                                return_log_kernel_value=True)
    Z = (0.5 * d * math.log(2.0 * math.pi)
         + jnp.sum(jnp.log(bw)) + math.log(float(n)))
    return jnp.sum(jnp.exp((log_k - Z) / Z), axis=-1)


# ---------------------------------------------------------------------------
# Self-test
# ---------------------------------------------------------------------------

if __name__ == "__main__":
    key = jax.random.PRNGKey(0)
    k1, k2 = jax.random.split(key)

    n_train, n_test, d = 64, 16, 32
    train_data = jax.random.normal(k1, (n_train, d), dtype=jnp.float32)
    test_data = jax.random.normal(k2, (n_test, d), dtype=jnp.float32)

    bw = scott_bandwidth(train_data)

    # 1) Pairwise log-kernel matrix (GaussianKernel, log branch) -- unfused kernel.
    log_k = jax.block_until_ready(
        gaussian_kernel(bw, test_data, train_data, return_log_kernel_value=True))
    ref_log_k = _gaussian_reference(bw, test_data, train_data,
                                    return_log_kernel_value=True)
    np.testing.assert_allclose(np.asarray(log_k), np.asarray(ref_log_k),
                               rtol=1e-4, atol=1e-3)

    # 2) Full MultivariateKDE forward (continuous features) -- fused kernel.
    density = jax.block_until_ready(
        multivariate_kde_forward(train_data, test_data,
                                 feature_is_continuous=True))
    ref_density = _kde_reference(train_data, test_data)
    np.testing.assert_allclose(np.asarray(density), np.asarray(ref_density),
                               rtol=1e-3, atol=1e-9)

    print("KERNEL_OK")
</pallas_src>

<mosaic_0001>
module attributes {stable_mosaic.version = 11 : i64} {
  func.func @kernel(%arg0: i32, %arg1: i32, %arg2: memref<16x1xf32, #tpu.memory_space<vmem>>, %arg3: memref<1x128xf32, #tpu.memory_space<vmem>>, %arg4: memref<16x128xf32, #tpu.memory_space<vmem>>, %arg5: memref<128x128xf32, #tpu.memory_space<vmem>>, %arg6: memref<16x128xf32, #tpu.memory_space<vmem>>) attributes {dimension_semantics = [#tpu.dimension_semantics<parallel>, #tpu.dimension_semantics<parallel>], iteration_bounds = array<i64: 1, 1>, scalar_prefetch = 0 : i64, scratch_operands = 0 : i64, tpu.core_type = #tpu.core_type<tc>, window_params = [{transform_indices = @transform_0, window_bounds = array<i64: 16, 1>}, {transform_indices = @transform_1, window_bounds = array<i64: 1, 128>}, {transform_indices = @transform_2, window_bounds = array<i64: 16, 128>}, {transform_indices = @transform_3, window_bounds = array<i64: 128, 128>}, {transform_indices = @transform_4, window_bounds = array<i64: 16, 128>}]} {
    %c0 = arith.constant 0 : index
    %c0_0 = arith.constant 0 : index
    %0 = vector.load %arg4[%c0, %c0_0] : memref<16x128xf32, #tpu.memory_space<vmem>>, vector<16x128xf32>
    %c0_1 = arith.constant 0 : index
    %c0_2 = arith.constant 0 : index
    %1 = vector.load %arg5[%c0_1, %c0_2] : memref<128x128xf32, #tpu.memory_space<vmem>>, vector<128x128xf32>
    %cst = arith.constant dense<0.000000e+00> : vector<16x128xf32>
    %2 = tpu.matmul %0, %1, %cst {dimension_numbers = #tpu.dot_dimension_numbers<[1], [0], [0], [1], [0, 0, 1, 1], [], []>, precision = #tpu.contract_precision<fp32>} : vector<16x128xf32>, vector<128x128xf32>, vector<16x128xf32> -> vector<16x128xf32>
    %c0_3 = arith.constant 0 : index
    %c0_4 = arith.constant 0 : index
    %3 = vector.load %arg2[%c0_3, %c0_4] : memref<16x1xf32, #tpu.memory_space<vmem>>, vector<16x1xf32>
    %c0_5 = arith.constant 0 : index
    %c0_6 = arith.constant 0 : index
    %4 = vector.load %arg3[%c0_5, %c0_6] : memref<1x128xf32, #tpu.memory_space<vmem>>, vector<1x128xf32>
    %5 = vector.broadcast %3 : vector<16x1xf32> to vector<16x128xf32>
    %6 = vector.broadcast %4 : vector<1x128xf32> to vector<16x128xf32>
    %7 = arith.addf %5, %6 : vector<16x128xf32>
    %cst_7 = arith.constant 2.000000e+00 : f32
    %8 = vector.broadcast %cst_7 : f32 to vector<16x128xf32>
    %9 = arith.mulf %8, %2 : vector<16x128xf32>
    %10 = arith.subf %7, %9 : vector<16x128xf32>
    %cst_8 = arith.constant 0.000000e+00 : f32
    %11 = vector.broadcast %cst_8 : f32 to vector<16x128xf32>
    %12 = arith.maximumf %10, %11 : vector<16x128xf32>
    %cst_9 = arith.constant -5.000000e-01 : f32
    %13 = vector.broadcast %cst_9 : f32 to vector<16x128xf32>
    %14 = arith.mulf %13, %12 : vector<16x128xf32>
    %c0_10 = arith.constant 0 : index
    %c0_11 = arith.constant 0 : index
    %15 = vector.load %arg6[%c0_10, %c0_11] : memref<16x128xf32, #tpu.memory_space<vmem>>, vector<16x128xf32>
    tpu.vector_store %arg6[%c0_10, %c0_11], %14 {strides = array<i32>} : memref<16x128xf32, #tpu.memory_space<vmem>>, vector<16x128xf32>,
    return
  }
  func.func @transform_0(%arg0: i32, %arg1: i32) -> (i32, i32) {
    %c0_i32 = arith.constant 0 : i32
    %c0_i32_0 = arith.constant 0 : i32
    return %arg0, %c0_i32 : i32, i32
  }
  func.func @transform_1(%arg0: i32, %arg1: i32) -> (i32, i32) {
    %c0_i32 = arith.constant 0 : i32
    %c0_i32_0 = arith.constant 0 : i32
    return %c0_i32, %arg1 : i32, i32
  }
  func.func @transform_2(%arg0: i32, %arg1: i32) -> (i32, i32) {
    %c0_i32 = arith.constant 0 : i32
    %c0_i32_0 = arith.constant 0 : i32
    return %arg0, %c0_i32 : i32, i32
  }
  func.func @transform_3(%arg0: i32, %arg1: i32) -> (i32, i32) {
    %c0_i32 = arith.constant 0 : i32
    %c0_i32_0 = arith.constant 0 : i32
    return %c0_i32, %arg1 : i32, i32
  }
  func.func @transform_4(%arg0: i32, %arg1: i32) -> (i32, i32) {
    %c0_i32 = arith.constant 0 : i32
    return %arg0, %arg1 : i32, i32
  }
}

</mosaic_0001>

<llo_original>
// kernel: tpu_custom_call.1
$region0: #{tpu_custom_call.1}
  #allocation0 [shape = 'u32[]', space=smem, size = 0x4, offset = 0x4, fixed_abs, tag = 'smem constant byte address 0x4 - core index']
  #allocation1 [shape = 'u32[72,128]{1,0:T(1,128)}', space=vmem, size = 0x9000, scoped, tag = 'internal scratch']
  %s0 = inlined_call_operand.vmem [shape: f32[16,1], index: 0, kind: input, shape index: {}]
  %s1 = inlined_call_operand.vmem [shape: f32[1,128], index: 1, kind: input, shape index: {}]
  %s2 = inlined_call_operand.vmem [shape: f32[16,128], index: 2, kind: input, shape index: {}]
  %s3 = inlined_call_operand.hbm [shape: f32[128,128], index: 3, kind: input, shape index: {}]
  %s4 = inlined_call_operand.hbm [shape: f32[16,128], index: 4, kind: output, shape index: {}]
  %s5 = sld [smem:[#allocation0]]
  $region30: #{tpu_custom_call.1} parent=0
    _
  %s7 = ssub.s32 1, %s5
  %s8 = scalar_select 0, %s7, %s5
  $region1: #{tpu_custom_call.1} parent=0
    #allocation2 [shape = 'u8[65536]{0}', space=vmem, size = 0x10000, scoped, tag = 'input window, operand 3, single buffered']
    #allocation3 [shape = 's32[1]{0}', space=sflag, size = 0x4, scoped, tag = 'scoped memory for tpu_custom_call.1']
    #allocation4 [shape = 's32[1]{0}', space=sflag, size = 0x4, scoped, tag = 'scoped memory for tpu_custom_call.1']
    #allocation5 [shape = 'u8[8192]{0}', space=vmem, size = 0x2000, scoped, tag = 'output window, operand 0, single buffered']
    %9 = vsyncpa [#allocation3], 0
    %10 = vsyncpa [#allocation4], 0
    // Predicated region
    $region2: #{tpu_custom_call.1} parent=1 // pred_check
      _
    $region3: #{tpu_custom_call.1} parent=1 // pred_check_branch
      %12 = sbr.rel (0) target = $region5
    $region4: #{tpu_custom_call.1} parent=1 // pred_region
      _
    $region5: #{tpu_custom_call.1} parent=1 // pred_fallthru
      _
    // Predicated region
    $region6: #{tpu_custom_call.1} parent=1 // pred_check
      _
    $region7: #{tpu_custom_call.1} parent=1 // pred_check_branch
      %14 = sbr.rel (0) target = $region9
    $region8: #{tpu_custom_call.1} parent=1 // pred_region
      _
    $region9: #{tpu_custom_call.1} parent=1 // pred_fallthru
      _
    // Predicated region
    $region10: #{tpu_custom_call.1} parent=1 // pred_check
      _
    $region11: #{tpu_custom_call.1} parent=1 // pred_check_branch
      %16 = sbr.rel (0) target = $region13
    $region12: #{tpu_custom_call.1} parent=1 // pred_region
      _
    $region13: #{tpu_custom_call.1} parent=1 // pred_fallthru
      _
    // Predicated region
    $region14: #{tpu_custom_call.1} parent=1 // pred_check
      _
    $region15: #{tpu_custom_call.1} parent=1 // pred_check_branch
      %18 = sbr.rel (0) target = $region17
    $region16: #{tpu_custom_call.1} parent=1 // pred_region
      %20 = vsyncadd [#allocation3], 0
      %s21 = sshll.u32 %s3, 4
      %s22 = int_to_ptr.hbm [resolvable:$true] %s21
      %s23 = sshll.u32 [#allocation2], 4
      %s24 = int_to_ptr.vmem [resolvable:$true] %s23
      %29 = dma.hbm_to_vmem [thread:$0]  %s22, 2048, %s24, [#allocation3], 128, 128, 8
    $region17: #{tpu_custom_call.1} parent=1 // pred_fallthru
      _
    // Predicated region
    $region18: #{tpu_custom_call.1} parent=1 // pred_check
      _
    $region19: #{tpu_custom_call.1} parent=1 // pred_check_branch
      %31 = sbr.rel (0) target = $region21
    $region20: #{tpu_custom_call.1} parent=1 // pred_region
      %33 = dma.done [#allocation3], 2048
    $region21: #{tpu_custom_call.1} parent=1 // pred_fallthru
      _
    %v34 = vld [vmem:[%s2] sm:$0xff]
    %v35 = vld [vmem:[%s2 + $0x8] sm:$0xff]
    %v36 = vld [vmem:[#allocation2] sm:$0xff]
    %v37 = vld [vmem:[#allocation2 + $0x8] sm:$0xff]
    %v38 = vld [vmem:[#allocation2 + $0x10] sm:$0xff]
    %v39 = vld [vmem:[#allocation2 + $0x18] sm:$0xff]
    %v40 = vld [vmem:[#allocation2 + $0x20] sm:$0xff]
    %v41 = vld [vmem:[#allocation2 + $0x28] sm:$0xff]
    %v42 = vld [vmem:[#allocation2 + $0x30] sm:$0xff]
    %v43 = vld [vmem:[#allocation2 + $0x38] sm:$0xff]
    %v44 = vld [vmem:[#allocation2 + $0x40] sm:$0xff]
    %v45 = vld [vmem:[#allocation2 + $0x48] sm:$0xff]
    %v46 = vld [vmem:[#allocation2 + $0x50] sm:$0xff]
    %v47 = vld [vmem:[#allocation2 + $0x58] sm:$0xff]
    %v48 = vld [vmem:[#allocation2 + $0x60] sm:$0xff]
    %v49 = vld [vmem:[#allocation2 + $0x68] sm:$0xff]
    %v50 = vld [vmem:[#allocation2 + $0x70] sm:$0xff]
    %v51 = vld [vmem:[#allocation2 + $0x78] sm:$0xff]
    %v52 = vand.u32 %v51, 4294901760
    %53 = vmatpush.msra.mxu0 %v52
    %v54 = vand.u32 %v50, 4294901760
    %55 = vmatpush.msra.mxu0 %v54
    %v56 = vand.u32 %v49, 4294901760
    %57 = vmatpush.msra.mxu0 %v56
    %v58 = vand.u32 %v48, 4294901760
    %59 = vmatpush.msra.mxu0 %v58
    %v60 = vand.u32 %v47, 4294901760
    %61 = vmatpush.msra.mxu0 %v60
    %v62 = vand.u32 %v46, 4294901760
    %63 = vmatpush.msra.mxu0 %v62
    %v64 = vand.u32 %v45, 4294901760
    %65 = vmatpush.msra.mxu0 %v64
    %v66 = vand.u32 %v44, 4294901760
    %67 = vmatpush.msra.mxu0 %v66
    %v68 = vand.u32 %v43, 4294901760
    %69 = vmatpush.msra.mxu0 %v68
    %v70 = vand.u32 %v42, 4294901760
    %71 = vmatpush.msra.mxu0 %v70
    %v72 = vand.u32 %v41, 4294901760
    %73 = vmatpush.msra.mxu0 %v72
    %v74 = vand.u32 %v40, 4294901760
    %75 = vmatpush.msra.mxu0 %v74
    %v76 = vand.u32 %v39, 4294901760
    %77 = vmatpush.msra.mxu0 %v76
    %v78 = vand.u32 %v38, 4294901760
    %79 = vmatpush.msra.mxu0 %v78
    %v80 = vand.u32 %v37, 4294901760
    %81 = vmatpush.msra.mxu0 %v80
    %v82 = vand.u32 %v36, 4294901760
    %83 = vmatpush.msra.mxu0 %v82
    %v84 = vand.u32 %v34, 4294901760
    %v85 = vsub.f32 %v34, %v84
    %v86 = vand.u32 %v85, 4294901760
    %v87 = vsub.f32 %v85, %v86
    %v88 = vand.u32 %v87, 4294901760
    %89 = vmatmul.f32.gmra.mxu0 %v88
    %v90 = vpop.f32.mrf.mxu0
    %v91 = vadd.f32 0.0, %v90
    %v92 = vand.u32 %v35, 4294901760
    %v93 = vsub.f32 %v35, %v92
    %v94 = vand.u32 %v93, 4294901760
    %v95 = vsub.f32 %v93, %v94
    %v96 = vand.u32 %v95, 4294901760
    %97 = vmatmul.f32.gmra.mxu0 %v96
    %v98 = vpop.f32.mrf.mxu0
    %v99 = vadd.f32 0.0, %v98
    %100 = vdwg.mxu0
    %v101 = vand.u32 %v51, 4294901760
    %v102 = vsub.f32 %v51, %v101
    %v103 = vand.u32 %v102, 4294901760
    %v104 = vsub.f32 %v102, %v103
    %v105 = vand.u32 %v104, 4294901760
    %106 = vmatpush.msra.mxu0 %v105
    %v107 = vand.u32 %v50, 4294901760
    %v108 = vsub.f32 %v50, %v107
    %v109 = vand.u32 %v108, 4294901760
    %v110 = vsub.f32 %v108, %v109
    %v111 = vand.u32 %v110, 4294901760
    %112 = vmatpush.msra.mxu0 %v111
    %v113 = vand.u32 %v49, 4294901760
    %v114 = vsub.f32 %v49, %v113
    %v115 = vand.u32 %v114, 4294901760
    %v116 = vsub.f32 %v114, %v115
    %v117 = vand.u32 %v116, 4294901760
    %118 = vmatpush.msra.mxu0 %v117
    %v119 = vand.u32 %v48, 4294901760
    %v120 = vsub.f32 %v48, %v119
    %v121 = vand.u32 %v120, 4294901760
    %v122 = vsub.f32 %v120, %v121
    %v123 = vand.u32 %v122, 4294901760
    %124 = vmatpush.msra.mxu0 %v123
    %v125 = vand.u32 %v47, 4294901760
    %v126 = vsub.f32 %v47, %v125
    %v127 = vand.u32 %v126, 4294901760
    %v128 = vsub.f32 %v126, %v127
    %v129 = vand.u32 %v128, 4294901760
    %130 = vmatpush.msra.mxu0 %v129
    %v131 = vand.u32 %v46, 4294901760
    %v132 = vsub.f32 %v46, %v131
    %v133 = vand.u32 %v132, 4294901760
    %v134 = vsub.f32 %v132, %v133
    %v135 = vand.u32 %v134, 4294901760
    %136 = vmatpush.msra.mxu0 %v135
    %v137 = vand.u32 %v45, 4294901760
    %v138 = vsub.f32 %v45, %v137
    %v139 = vand.u32 %v138, 4294901760
    %v140 = vsub.f32 %v138, %v139
    %v141 = vand.u32 %v140, 4294901760
    %142 = vmatpush.msra.mxu0 %v141
    %v143 = vand.u32 %v44, 4294901760
    %v144 = vsub.f32 %v44, %v143
    %v145 = vand.u32 %v144, 4294901760
    %v146 = vsub.f32 %v144, %v145
    %v147 = vand.u32 %v146, 4294901760
    %148 = vmatpush.msra.mxu0 %v147
    %v149 = vand.u32 %v43, 4294901760
    %v150 = vsub.f32 %v43, %v149
    %v151 = vand.u32 %v150, 4294901760
    %v152 = vsub.f32 %v150, %v151
    %v153 = vand.u32 %v152, 4294901760
    %154 = vmatpush.msra.mxu0 %v153
    %v155 = vand.u32 %v42, 4294901760
    %v156 = vsub.f32 %v42, %v155
    %v157 = vand.u32 %v156, 4294901760
    %v158 = vsub.f32 %v156, %v157
    %v159 = vand.u32 %v158, 4294901760
    %160 = vmatpush.msra.mxu0 %v159
    %v161 = vand.u32 %v41, 4294901760
    %v162 = vsub.f32 %v41, %v161
    %v163 = vand.u32 %v162, 4294901760
    %v164 = vsub.f32 %v162, %v163
    %v165 = vand.u32 %v164, 4294901760
    %166 = vmatpush.msra.mxu0 %v165
    %v167 = vand.u32 %v40, 4294901760
    %v168 = vsub.f32 %v40, %v167
    %v169 = vand.u32 %v168, 4294901760
    %v170 = vsub.f32 %v168, %v169
    %v171 = vand.u32 %v170, 4294901760
    %172 = vmatpush.msra.mxu0 %v171
    %v173 = vand.u32 %v39, 4294901760
    %v174 = vsub.f32 %v39, %v173
    %v175 = vand.u32 %v174, 4294901760
    %v176 = vsub.f32 %v174, %v175
    %v177 = vand.u32 %v176, 4294901760
    %178 = vmatpush.msra.mxu0 %v177
    %v179 = vand.u32 %v38, 4294901760
    %v180 = vsub.f32 %v38, %v179
    %v181 = vand.u32 %v180, 4294901760
    %v182 = vsub.f32 %v180, %v181
    %v183 = vand.u32 %v182, 4294901760
    %184 = vmatpush.msra.mxu0 %v183
    %v185 = vand.u32 %v37, 4294901760
    %v186 = vsub.f32 %v37, %v185
    %v187 = vand.u32 %v186, 4294901760
    %v188 = vsub.f32 %v186, %v187
    %v189 = vand.u32 %v188, 4294901760
    %190 = vmatpush.msra.mxu0 %v189
    %v191 = vand.u32 %v36, 4294901760
    %v192 = vsub.f32 %v36, %v191
    %v193 = vand.u32 %v192, 4294901760
    %v194 = vsub.f32 %v192, %v193
    %v195 = vand.u32 %v194, 4294901760
    %196 = vmatpush.msra.mxu0 %v195
    %v197 = vand.u32 %v34, 4294901760
    %198 = vmatmul.f32.gmra.mxu0 %v197
    %v199 = vpop.f32.mrf.mxu0
    %v200 = vadd.f32 %v91, %v199
    %v201 = vand.u32 %v35, 4294901760
    %202 = vmatmul.f32.gmra.mxu0 %v201
    %v203 = vpop.f32.mrf.mxu0
    %v204 = vadd.f32 %v99, %v203
    %205 = vdwg.mxu0
    %v206 = vand.u32 %v51, 4294901760
    %v207 = vsub.f32 %v51, %v206
    %208 = vmatpush.msra.mxu0 %v207
    %v209 = vand.u32 %v50, 4294901760
    %v210 = vsub.f32 %v50, %v209
    %211 = vmatpush.msra.mxu0 %v210
    %v212 = vand.u32 %v49, 4294901760
    %v213 = vsub.f32 %v49, %v212
    %214 = vmatpush.msra.mxu0 %v213
    %v215 = vand.u32 %v48, 4294901760
    %v216 = vsub.f32 %v48, %v215
    %217 = vmatpush.msra.mxu0 %v216
    %v218 = vand.u32 %v47, 4294901760
    %v219 = vsub.f32 %v47, %v218
    %220 = vmatpush.msra.mxu0 %v219
    %v221 = vand.u32 %v46, 4294901760
    %v222 = vsub.f32 %v46, %v221
    %223 = vmatpush.msra.mxu0 %v222
    %v224 = vand.u32 %v45, 4294901760
    %v225 = vsub.f32 %v45, %v224
    %226 = vmatpush.msra.mxu0 %v225
    %v227 = vand.u32 %v44, 4294901760
    %v228 = vsub.f32 %v44, %v227
    %229 = vmatpush.msra.mxu0 %v228
    %v230 = vand.u32 %v43, 4294901760
    %v231 = vsub.f32 %v43, %v230
    %232 = vmatpush.msra.mxu0 %v231
    %v233 = vand.u32 %v42, 4294901760
    %v234 = vsub.f32 %v42, %v233
    %235 = vmatpush.msra.mxu0 %v234
    %v236 = vand.u32 %v41, 4294901760
    %v237 = vsub.f32 %v41, %v236
    %238 = vmatpush.msra.mxu0 %v237
    %v239 = vand.u32 %v40, 4294901760
    %v240 = vsub.f32 %v40, %v239
    %241 = vmatpush.msra.mxu0 %v240
    %v242 = vand.u32 %v39, 4294901760
    %v243 = vsub.f32 %v39, %v242
    %244 = vmatpush.msra.mxu0 %v243
    %v245 = vand.u32 %v38, 4294901760
    %v246 = vsub.f32 %v38, %v245
    %247 = vmatpush.msra.mxu0 %v246
    %v248 = vand.u32 %v37, 4294901760
    %v249 = vsub.f32 %v37, %v248
    %250 = vmatpush.msra.mxu0 %v249
    %v251 = vand.u32 %v36, 4294901760
    %v252 = vsub.f32 %v36, %v251
    %253 = vmatpush.msra.mxu0 %v252
    %v254 = vand.u32 %v34, 4294901760
    %v255 = vsub.f32 %v34, %v254
    %256 = vmatmul.f32.gmra.mxu0 %v255
    %v257 = vpop.f32.mrf.mxu0
    %v258 = vadd.f32 %v200, %v257
    %v259 = vand.u32 %v35, 4294901760
    %v260 = vsub.f32 %v35, %v259
    %261 = vmatmul.f32.gmra.mxu0 %v260
    %v262 = vpop.f32.mrf.mxu0
    %v263 = vadd.f32 %v204, %v262
    %264 = vdwg.mxu0
    %v265 = vand.u32 %v51, 4294901760
    %266 = vmatpush.msra.mxu0 %v265
    %v267 = vand.u32 %v50, 4294901760
    %268 = vmatpush.msra.mxu0 %v267
    %v269 = vand.u32 %v49, 4294901760
    %270 = vmatpush.msra.mxu0 %v269
    %v271 = vand.u32 %v48, 4294901760
    %272 = vmatpush.msra.mxu0 %v271
    %v273 = vand.u32 %v47, 4294901760
    %274 = vmatpush.msra.mxu0 %v273
    %v275 = vand.u32 %v46, 4294901760
    %276 = vmatpush.msra.mxu0 %v275
    %v277 = vand.u32 %v45, 4294901760
    %278 = vmatpush.msra.mxu0 %v277
    %v279 = vand.u32 %v44, 4294901760
    %280 = vmatpush.msra.mxu0 %v279
    %v281 = vand.u32 %v43, 4294901760
    %282 = vmatpush.msra.mxu0 %v281
    %v283 = vand.u32 %v42, 4294901760
    %284 = vmatpush.msra.mxu0 %v283
    %v285 = vand.u32 %v41, 4294901760
    %286 = vmatpush.msra.mxu0 %v285
    %v287 = vand.u32 %v40, 4294901760
    %288 = vmatpush.msra.mxu0 %v287
    %v289 = vand.u32 %v39, 4294901760
    %290 = vmatpush.msra.mxu0 %v289
    %v291 = vand.u32 %v38, 4294901760
    %292 = vmatpush.msra.mxu0 %v291
    %v293 = vand.u32 %v37, 4294901760
    %294 = vmatpush.msra.mxu0 %v293
    %v295 = vand.u32 %v36, 4294901760
    %296 = vmatpush.msra.mxu0 %v295
    %v297 = vand.u32 %v34, 4294901760
    %v298 = vsub.f32 %v34, %v297
    %v299 = vand.u32 %v298, 4294901760
    %300 = vmatmul.f32.gmra.mxu0 %v299
    %v301 = vpop.f32.mrf.mxu0
    %v302 = vadd.f32 %v258, %v301
    %v303 = vand.u32 %v35, 4294901760
    %v304 = vsub.f32 %v35, %v303
    %v305 = vand.u32 %v304, 4294901760
    %306 = vmatmul.f32.gmra.mxu0 %v305
    %v307 = vpop.f32.mrf.mxu0
    %v308 = vadd.f32 %v263, %v307
    %309 = vdwg.mxu0
    %v310 = vand.u32 %v51, 4294901760
    %v311 = vsub.f32 %v51, %v310
    %v312 = vand.u32 %v311, 4294901760
    %313 = vmatpush.msra.mxu0 %v312
    %v314 = vand.u32 %v50, 4294901760
    %v315 = vsub.f32 %v50, %v314
    %v316 = vand.u32 %v315, 4294901760
    %317 = vmatpush.msra.mxu0 %v316
    %v318 = vand.u32 %v49, 4294901760
    %v319 = vsub.f32 %v49, %v318
    %v320 = vand.u32 %v319, 4294901760
    %321 = vmatpush.msra.mxu0 %v320
    %v322 = vand.u32 %v48, 4294901760
    %v323 = vsub.f32 %v48, %v322
    %v324 = vand.u32 %v323, 4294901760
    %325 = vmatpush.msra.mxu0 %v324
    %v326 = vand.u32 %v47, 4294901760
    %v327 = vsub.f32 %v47, %v326
    %v328 = vand.u32 %v327, 4294901760
    %329 = vmatpush.msra.mxu0 %v328
    %v330 = vand.u32 %v46, 4294901760
    %v331 = vsub.f32 %v46, %v330
    %v332 = vand.u32 %v331, 4294901760
    %333 = vmatpush.msra.mxu0 %v332
    %v334 = vand.u32 %v45, 4294901760
    %v335 = vsub.f32 %v45, %v334
    %v336 = vand.u32 %v335, 4294901760
    %337 = vmatpush.msra.mxu0 %v336
    %v338 = vand.u32 %v44, 4294901760
    %v339 = vsub.f32 %v44, %v338
    %v340 = vand.u32 %v339, 4294901760
    %341 = vmatpush.msra.mxu0 %v340
    %v342 = vand.u32 %v43, 4294901760
    %v343 = vsub.f32 %v43, %v342
    %v344 = vand.u32 %v343, 4294901760
    %345 = vmatpush.msra.mxu0 %v344
    %v346 = vand.u32 %v42, 4294901760
    %v347 = vsub.f32 %v42, %v346
    %v348 = vand.u32 %v347, 4294901760
    %349 = vmatpush.msra.mxu0 %v348
    %v350 = vand.u32 %v41, 4294901760
    %v351 = vsub.f32 %v41, %v350
    %v352 = vand.u32 %v351, 4294901760
    %353 = vmatpush.msra.mxu0 %v352
    %v354 = vand.u32 %v40, 4294901760
    %v355 = vsub.f32 %v40, %v354
    %v356 = vand.u32 %v355, 4294901760
    %357 = vmatpush.msra.mxu0 %v356
    %v358 = vand.u32 %v39, 4294901760
    %v359 = vsub.f32 %v39, %v358
    %v360 = vand.u32 %v359, 4294901760
    %361 = vmatpush.msra.mxu0 %v360
    %v362 = vand.u32 %v38, 4294901760
    %v363 = vsub.f32 %v38, %v362
    %v364 = vand.u32 %v363, 4294901760
    %365 = vmatpush.msra.mxu0 %v364
    %v366 = vand.u32 %v37, 4294901760
    %v367 = vsub.f32 %v37, %v366
    %v368 = vand.u32 %v367, 4294901760
    %369 = vmatpush.msra.mxu0 %v368
    %v370 = vand.u32 %v36, 4294901760
    %v371 = vsub.f32 %v36, %v370
    %v372 = vand.u32 %v371, 4294901760
    %373 = vmatpush.msra.mxu0 %v372
    %v374 = vand.u32 %v34, 4294901760
    %375 = vmatmul.f32.gmra.mxu0 %v374
    %v376 = vpop.f32.mrf.mxu0
    %v377 = vadd.f32 %v302, %v376
    %v378 = vand.u32 %v35, 4294901760
    %379 = vmatmul.f32.gmra.mxu0 %v378
    %v380 = vpop.f32.mrf.mxu0
    %v381 = vadd.f32 %v308, %v380
    %382 = vdwg.mxu0
    %v383 = vand.u32 %v51, 4294901760
    %384 = vmatpush.msra.mxu0 %v383
    %v385 = vand.u32 %v50, 4294901760
    %386 = vmatpush.msra.mxu0 %v385
    %v387 = vand.u32 %v49, 4294901760
    %388 = vmatpush.msra.mxu0 %v387
    %v389 = vand.u32 %v48, 4294901760
    %390 = vmatpush.msra.mxu0 %v389
    %v391 = vand.u32 %v47, 4294901760
    %392 = vmatpush.msra.mxu0 %v391
    %v393 = vand.u32 %v46, 4294901760
    %394 = vmatpush.msra.mxu0 %v393
    %v395 = vand.u32 %v45, 4294901760
    %396 = vmatpush.msra.mxu0 %v395
    %v397 = vand.u32 %v44, 4294901760
    %398 = vmatpush.msra.mxu0 %v397
    %v399 = vand.u32 %v43, 4294901760
    %400 = vmatpush.msra.mxu0 %v399
    %v401 = vand.u32 %v42, 4294901760
    %402 = vmatpush.msra.mxu0 %v401
    %v403 = vand.u32 %v41, 4294901760
    %404 = vmatpush.msra.mxu0 %v403
    %v405 = vand.u32 %v40, 4294901760
    %406 = vmatpush.msra.mxu0 %v405
    %v407 = vand.u32 %v39, 4294901760
    %408 = vmatpush.msra.mxu0 %v407
    %v409 = vand.u32 %v38, 4294901760
    %410 = vmatpush.msra.mxu0 %v409
    %v411 = vand.u32 %v37, 4294901760
    %412 = vmatpush.msra.mxu0 %v411
    %v413 = vand.u32 %v36, 4294901760
    %414 = vmatpush.msra.mxu0 %v413
    %v415 = vand.u32 %v34, 4294901760
    %416 = vmatmul.f32.gmra.mxu0 %v415
    %v417 = vpop.f32.mrf.mxu0
    %v418 = vadd.f32 %v377, %v417
    %v419 = vand.u32 %v35, 4294901760
    %420 = vmatmul.f32.gmra.mxu0 %v419
    %v421 = vpop.f32.mrf.mxu0
    %v422 = vadd.f32 %v381, %v421
    %423 = vdwg.mxu0
    %v424 = vld [vmem:[%s0] sm:$0xff]
    %v425 = vld [vmem:[%s0 + $0x8] sm:$0xff]
    %v426 = vld [vmem:[%s1] sm:$0x1]
    %428 = vset.pattern.permute.xlu0 0
    %429 = vperm.xlu0 %428, %v424
    %v430 = vpop.permute.xlu0 %429
    %433 = vset.pattern.permute.xlu0 0
    %434 = vperm.xlu0 %433, %v425
    %v435 = vpop.permute.xlu0 %434
    %v438 = vperm.slane %v426, 0
    %v440 = vadd.f32 %v430, %v438
    %v441 = vadd.f32 %v435, %v438
    %v442 = vmul.f32 %v418, 2.0
    %v443 = vmul.f32 %v422, 2.0
    %v444 = vsub.f32 %v440, %v442
    %v445 = vsub.f32 %v441, %v443
    %v446 = vmax.f32 %v444, 0.0
    %v447 = vmax.f32 %v445, 0.0
    %v448 = vmul.f32 %v446, -0.5
    %v449 = vmul.f32 %v447, -0.5
    %450 = vst [vmem:[#allocation5] sm:$0xff] %v448
    %451 = vst [vmem:[#allocation5 + $0x8] sm:$0xff] %v449
    // Predicated region
    $region22: #{tpu_custom_call.1} parent=1 // pred_check
      _
    $region23: #{tpu_custom_call.1} parent=1 // pred_check_branch
      %453 = sbr.rel (0) target = $region25
    $region24: #{tpu_custom_call.1} parent=1 // pred_region
      %455 = vsyncadd [#allocation4], 0
      %s456 = sshll.u32 [#allocation5], 4
      %s457 = int_to_ptr.vmem [resolvable:$true] %s456
      %s458 = sshll.u32 %s4, 4
      %s459 = int_to_ptr.hbm [resolvable:$true] %s458
      %464 = dma.vmem_to_hbm [thread:$0]  %s457, 256, %s459, [#allocation4], 128, 128, 8
    $region25: #{tpu_custom_call.1} parent=1 // pred_fallthru
      _
    // Predicated region
    $region26: #{tpu_custom_call.1} parent=1 // pred_check
      _
    $region27: #{tpu_custom_call.1} parent=1 // pred_check_branch
      %466 = sbr.rel (0) target = $region29
    $region28: #{tpu_custom_call.1} parent=1 // pred_region
      %468 = dma.done [#allocation4], 256
    $region29: #{tpu_custom_call.1} parent=1 // pred_fallthru
      _
    %469 = vsyncpa [#allocation3], 1
    %470 = vsyncpa [#allocation4], 1

</llo_original>
